<compile_context>
chip_gen: v7x
topology: tpu7x:2x2x1
jax: 0.10.0
libtpu: 0.0.40
codegen_flags: <defaults>
</compile_context>

<pallas_src>
import functools

import jax
import jax.numpy as jnp
from jax.experimental import pallas as pl
from jax.experimental.pallas import tpu as pltpu

GROUP = 64        # samples packed per wide row: 10*64 = 640 lanes (5*128)


def _round_up(n, m):
    return ((n + m - 1) // m) * m


def _linear_kernel(x_ref, w_ref, b_ref, o_ref):
    """One batch tile: y = x @ blockdiag(W^T) + tiled_bias, all lane-dense.

    x_ref: (TR, 640)  f32 VMEM -- 64 samples (10 features each) per row
    w_ref: (640, 128) f32 VMEM -- kron(I_64, W^T), block-diagonal, resident
    b_ref: (1, 128)   f32 VMEM -- bias tiled 64x, resident
    o_ref: (TR, 128)          -- 64 samples (2 outputs each) per row
    """
    acc = jnp.dot(x_ref[...], w_ref[...], preferred_element_type=jnp.float32)
    o_ref[...] = (acc + b_ref[...].astype(jnp.float32)).astype(o_ref.dtype)


@functools.partial(jax.jit, static_argnames=("tb_samples", "min_pallas_batch"))
def linear_pallas(x, weight, bias, *, tb_samples=65536, min_pallas_batch=4096):
    """x: (B, 10); weight: (2, 10) [PyTorch layout]; bias: (2,). Returns (B, 2)."""
    B, in_f = x.shape
    out_f = weight.shape[0]

    # Tiny batches: launch + padding overhead can never be amortized.
    if B < min_pallas_batch:
        return x @ weight.T + bias

    wide_in = in_f * GROUP        # 640  (lane-dense: multiple of 128)
    wide_out = out_f * GROUP      # 128

    # Row geometry: R wide rows of GROUP samples, R a multiple of 8 so every
    # block is (8,128)-aligned and the MXU sees clean shapes.
    R = _round_up(-(-B // GROUP), 8)
    tr_max = max(8, _round_up(tb_samples // GROUP, 8))
    if R <= tr_max:
        ntiles, tr = 1, R
    else:
        ntiles = -(-R // tr_max)
        tr = _round_up(-(-R // ntiles), 8)     # bounds padding waste per batch
    r_pad = ntiles * tr
    b_pad = r_pad * GROUP

    if b_pad != B:
        # TODO(synk): for huge batches that are not GROUP-aligned, handle the
        # <GROUP-sample remainder with a separate XLA matmul instead of this
        # pad (the pad is one extra read+write of x).
        x = jnp.pad(x, ((0, b_pad - B), (0, 0)))

    x_wide = x.reshape(r_pad, wide_in)                                 # free
    w_blkdiag = jnp.kron(jnp.eye(GROUP, dtype=weight.dtype), weight.T)  # (640,128)
    b_wide = jnp.tile(bias, GROUP).reshape(1, wide_out)                 # (1,128)

    y_wide = pl.pallas_call(
        _linear_kernel,
        out_shape=jax.ShapeDtypeStruct((r_pad, wide_out), x.dtype),
        grid=(ntiles,),
        in_specs=[
            pl.BlockSpec((tr, wide_in), lambda i: (i, 0)),        # x tile
            pl.BlockSpec((wide_in, wide_out), lambda i: (0, 0)),  # weight (resident)
            pl.BlockSpec((1, wide_out), lambda i: (0, 0)),        # bias (resident)
        ],
        out_specs=pl.BlockSpec((tr, wide_out), lambda i: (i, 0)),
        compiler_params=pltpu.CompilerParams(
            # TODO(synk): on v7x verify the batch axis actually shards across
            # both TensorCores; if not, switch to pltpu.CORE_PARALLEL.
            dimension_semantics=("parallel",),
            vmem_limit_bytes=32 * 1024 * 1024,
        ),
        cost_estimate=pl.CostEstimate(
            flops=2 * r_pad * wide_in * wide_out,
            bytes_accessed=4 * (r_pad * wide_in + r_pad * wide_out
                                + wide_in * wide_out + wide_out),
            transcendentals=0,
        ),
    )(x_wide, w_blkdiag, b_wide)

    y = y_wide.reshape(b_pad, out_f)                                   # free
    return y if b_pad == B else y[:B]


if __name__ == "__main__":
    key = jax.random.PRNGKey(0)
    k_x, k_w, k_b, k_x2 = jax.random.split(key, 4)

    IN, OUT = 10, 2

    # nn.Linear default init: uniform(-1/sqrt(in_features), +1/sqrt(in_features)).
    bound = 1.0 / jnp.sqrt(jnp.float32(IN))
    weight = jax.random.uniform(k_w, (OUT, IN), jnp.float32, -bound, bound)
    bias = jax.random.uniform(k_b, (OUT,), jnp.float32, -bound, bound)

    # Small batch, forced through the Pallas path (min_pallas_batch=0).
    x_small = jax.random.normal(k_x, (8, IN), jnp.float32)
    y_small = linear_pallas(x_small, weight, bias, min_pallas_batch=0)
    jax.block_until_ready(y_small)
    ref_small = x_small @ weight.T + bias
    assert y_small.shape == (8, OUT)
    assert jnp.allclose(y_small, ref_small, atol=1e-5, rtol=1e-5)

    # Non-GROUP-aligned batch (exercises pad + final slice), forced Pallas.
    x_odd = jax.random.normal(k_x2, (200, IN), jnp.float32)
    y_odd = linear_pallas(x_odd, weight, bias, min_pallas_batch=0)
    jax.block_until_ready(y_odd)
    ref_odd = x_odd @ weight.T + bias
    assert y_odd.shape == (200, OUT)
    assert jnp.allclose(y_odd, ref_odd, atol=1e-5, rtol=1e-5)

    print("KERNEL_OK")
</pallas_src>

<mosaic_0001>
module attributes {stable_mosaic.version = 11 : i64} {
  func.func @_linear_kernel(%arg0: i32, %arg1: memref<8x640xf32, #tpu.memory_space<vmem>>, %arg2: memref<640x128xf32, #tpu.memory_space<vmem>>, %arg3: memref<1x128xf32, #tpu.memory_space<vmem>>, %arg4: memref<8x128xf32, #tpu.memory_space<vmem>>) attributes {dimension_semantics = [#tpu.dimension_semantics<parallel>], iteration_bounds = array<i64: 1>, scalar_prefetch = 0 : i64, scratch_operands = 0 : i64, tpu.core_type = #tpu.core_type<tc>, window_params = [{transform_indices = @transform_0, window_bounds = array<i64: 8, 640>}, {pipeline_mode = #tpu.pipeline_mode<synchronous>, transform_indices = @transform_1, window_bounds = array<i64: 640, 128>}, {pipeline_mode = #tpu.pipeline_mode<synchronous>, transform_indices = @transform_2, window_bounds = array<i64: 1, 128>}, {transform_indices = @transform_3, window_bounds = array<i64: 8, 128>}]} {
    %c0 = arith.constant 0 : index
    %c0_0 = arith.constant 0 : index
    %0 = vector.load %arg1[%c0, %c0_0] : memref<8x640xf32, #tpu.memory_space<vmem>>, vector<8x640xf32>
    %c0_1 = arith.constant 0 : index
    %c0_2 = arith.constant 0 : index
    %1 = vector.load %arg2[%c0_1, %c0_2] : memref<640x128xf32, #tpu.memory_space<vmem>>, vector<640x128xf32>
    %cst = arith.constant dense<0.000000e+00> : vector<8x128xf32>
    %2 = tpu.matmul %0, %1, %cst {dimension_numbers = #tpu.dot_dimension_numbers<[1], [0], [0], [1], [0, 0, 1, 1], [], []>} : vector<8x640xf32>, vector<640x128xf32>, vector<8x128xf32> -> vector<8x128xf32>
    %c0_3 = arith.constant 0 : index
    %c0_4 = arith.constant 0 : index
    %3 = vector.load %arg3[%c0_3, %c0_4] : memref<1x128xf32, #tpu.memory_space<vmem>>, vector<1x128xf32>
    %4 = vector.broadcast %3 : vector<1x128xf32> to vector<8x128xf32>
    %5 = arith.addf %2, %4 : vector<8x128xf32>
    %c0_5 = arith.constant 0 : index
    %c0_6 = arith.constant 0 : index
    %6 = vector.load %arg4[%c0_5, %c0_6] : memref<8x128xf32, #tpu.memory_space<vmem>>, vector<8x128xf32>
    tpu.vector_store %arg4[%c0_5, %c0_6], %5 {strides = array<i32>} : memref<8x128xf32, #tpu.memory_space<vmem>>, vector<8x128xf32>,
    return
  }
  func.func @transform_0(%arg0: i32) -> (i32, i32) {
    %c0_i32 = arith.constant 0 : i32
    %c0_i32_0 = arith.constant 0 : i32
    return %arg0, %c0_i32 : i32, i32
  }
  func.func @transform_1(%arg0: i32) -> (i32, i32) {
    %c0_i32 = arith.constant 0 : i32
    %c0_i32_0 = arith.constant 0 : i32
    %c0_i32_1 = arith.constant 0 : i32
    return %c0_i32, %c0_i32_0 : i32, i32
  }
  func.func @transform_2(%arg0: i32) -> (i32, i32) {
    %c0_i32 = arith.constant 0 : i32
    %c0_i32_0 = arith.constant 0 : i32
    %c0_i32_1 = arith.constant 0 : i32
    return %c0_i32, %c0_i32_0 : i32, i32
  }
  func.func @transform_3(%arg0: i32) -> (i32, i32) {
    %c0_i32 = arith.constant 0 : i32
    %c0_i32_0 = arith.constant 0 : i32
    return %arg0, %c0_i32 : i32, i32
  }
}

</mosaic_0001>

<llo_original>
// kernel: tile.8
$region0: #{tile.8}
  #allocation0 [shape = 's32[1]{0}', space=sflag, size = 0x4, scoped, tag = 'scoped memory for tile.8']
  %s0 = inlined_call_operand.vmem [shape: f32[2], index: 0, kind: input, shape index: {}]
  %s1 = inlined_call_operand.vmem [shape: f32[64,2], index: 1, kind: output, shape index: {}]
  // Predicated region
  $region2: #{tile.8} parent=0 // pred_check
    _
  $region3: #{tile.8} parent=0 // pred_check_branch
    %3 = sbr.rel (0) target = $region5
  $region4: #{tile.8} parent=0 // pred_region
    _
  $region5: #{tile.8} parent=0 // pred_fallthru
    _
  %v4 = vld [vmem:[%s0] ss:$0 sm:$0xff]
  %5 = vst [vmem:[%s1] sm:$0xff] %v4
  %s6 = scalar_lea.vmem %s1, 8
  %7 = vst [vmem:[%s6] sm:$0xff] %v4
  %s8 = scalar_lea.vmem %s1, 16
  %9 = vst [vmem:[%s8] sm:$0xff] %v4
  %s10 = scalar_lea.vmem %s1, 24
  %11 = vst [vmem:[%s10] sm:$0xff] %v4
  %s12 = scalar_lea.vmem %s1, 32
  %13 = vst [vmem:[%s12] sm:$0xff] %v4
  %s14 = scalar_lea.vmem %s1, 40
  %15 = vst [vmem:[%s14] sm:$0xff] %v4
  %s16 = scalar_lea.vmem %s1, 48
  %17 = vst [vmem:[%s16] sm:$0xff] %v4
  %s18 = scalar_lea.vmem %s1, 56
  %19 = vst [vmem:[%s18] sm:$0xff] %v4

// kernel: tile.9
$region0: #{tile.9}
  %s0 = inlined_call_operand.vmem [shape: f32[64,2], index: 0, kind: input, shape index: {}]
  %s1 = inlined_call_operand.vmem [shape: f32[1,128], index: 1, kind: output, shape index: {}]
  $region1: #{tile.9} parent=0
    #allocation0 [shape = 'u8[4096]{0}', space=vmem, size = 0x1000, scoped, tag = 'scoped mem for output reshape']
    %v2 = vld [vmem:[%s0] sm:$0x1]
    %vm3 = vcmask 15360
    %4 = vst.msk [vmem:[#allocation0] sm:$0x1] %vm3, %v2
    %s5 = scalar_lea.vmem %s0, 63
    %v6 = vld [vmem:[%s5] sm:$0x1]
    %7 = vrot.lane.b32.xlu0 %v6, 126
    %v8 = vpop.permute.xlu0 %7
    %vm9 = vcmask 1048560
    %10 = vst.msk [vmem:[#allocation0] sm:$0x1] %vm9, %v8
    %s11 = scalar_lea.vmem %s0, 62
    %v12 = vld [vmem:[%s11] sm:$0x1]
    %13 = vrot.lane.b32.xlu0 %v12, 124
    %v14 = vpop.permute.xlu0 %13
    %vm15 = vcmask 1032160
    %16 = vst.msk [vmem:[#allocation0] sm:$0x1] %vm15, %v14
    %s17 = scalar_lea.vmem %s0, 61
    %v18 = vld [vmem:[%s17] sm:$0x1]
    %19 = vrot.lane.b32.xlu0 %v18, 122
    %v20 = vpop.permute.xlu0 %19
    %vm21 = vcmask 1015760
    %22 = vst.msk [vmem:[#allocation0] sm:$0x1] %vm21, %v20
    %s23 = scalar_lea.vmem %s0, 60
    %v24 = vld [vmem:[%s23] sm:$0x1]
    %25 = vrot.lane.b32.xlu0 %v24, 120
    %v26 = vpop.permute.xlu0 %25
    %vm27 = vcmask 999360
    %28 = vst.msk [vmem:[#allocation0] sm:$0x1] %vm27, %v26
    %s29 = scalar_lea.vmem %s0, 59
    %v30 = vld [vmem:[%s29] sm:$0x1]
    %31 = vrot.lane.b32.xlu0 %v30, 118
    %v32 = vpop.permute.xlu0 %31
    %vm33 = vcmask 982960
    %34 = vst.msk [vmem:[#allocation0] sm:$0x1] %vm33, %v32
    %s35 = scalar_lea.vmem %s0, 58
    %v36 = vld [vmem:[%s35] sm:$0x1]
    %37 = vrot.lane.b32.xlu0 %v36, 116
    %v38 = vpop.permute.xlu0 %37
    %vm39 = vcmask 966560
    %40 = vst.msk [vmem:[#allocation0] sm:$0x1] %vm39, %v38
    %s41 = scalar_lea.vmem %s0, 57
    %v42 = vld [vmem:[%s41] sm:$0x1]
    %43 = vrot.lane.b32.xlu0 %v42, 114
    %v44 = vpop.permute.xlu0 %43
    %vm45 = vcmask 950160
    %46 = vst.msk [vmem:[#allocation0] sm:$0x1] %vm45, %v44
    %s47 = scalar_lea.vmem %s0, 56
    %v48 = vld [vmem:[%s47] sm:$0x1]
    %49 = vrot.lane.b32.xlu0 %v48, 112
    %v50 = vpop.permute.xlu0 %49
    %vm51 = vcmask 933760
    %52 = vst.msk [vmem:[#allocation0] sm:$0x1] %vm51, %v50
    %s53 = scalar_lea.vmem %s0, 55
    %v54 = vld [vmem:[%s53] sm:$0x1]
    %55 = vrot.lane.b32.xlu0 %v54, 110
    %v56 = vpop.permute.xlu0 %55
    %vm57 = vcmask 917360
    %58 = vst.msk [vmem:[#allocation0] sm:$0x1] %vm57, %v56
    %s59 = scalar_lea.vmem %s0, 54
    %v60 = vld [vmem:[%s59] sm:$0x1]
    %61 = vrot.lane.b32.xlu0 %v60, 108
    %v62 = vpop.permute.xlu0 %61
    %vm63 = vcmask 900960
    %64 = vst.msk [vmem:[#allocation0] sm:$0x1] %vm63, %v62
    %s65 = scalar_lea.vmem %s0, 53
    %v66 = vld [vmem:[%s65] sm:$0x1]
    %67 = vrot.lane.b32.xlu0 %v66, 106
    %v68 = vpop.permute.xlu0 %67
    %vm69 = vcmask 884560
    %70 = vst.msk [vmem:[#allocation0] sm:$0x1] %vm69, %v68
    %s71 = scalar_lea.vmem %s0, 52
    %v72 = vld [vmem:[%s71] sm:$0x1]
    %73 = vrot.lane.b32.xlu0 %v72, 104
    %v74 = vpop.permute.xlu0 %73
    %vm75 = vcmask 868160
    %76 = vst.msk [vmem:[#allocation0] sm:$0x1] %vm75, %v74
    %s77 = scalar_lea.vmem %s0, 51
    %v78 = vld [vmem:[%s77] sm:$0x1]
    %79 = vrot.lane.b32.xlu0 %v78, 102
    %v80 = vpop.permute.xlu0 %79
    %vm81 = vcmask 851760
    %82 = vst.msk [vmem:[#allocation0] sm:$0x1] %vm81, %v80
    %s83 = scalar_lea.vmem %s0, 50
    %v84 = vld [vmem:[%s83] sm:$0x1]
    %85 = vrot.lane.b32.xlu0 %v84, 100
    %v86 = vpop.permute.xlu0 %85
    %vm87 = vcmask 835360
    %88 = vst.msk [vmem:[#allocation0] sm:$0x1] %vm87, %v86
    %s89 = scalar_lea.vmem %s0, 49
    %v90 = vld [vmem:[%s89] sm:$0x1]
    %91 = vrot.lane.b32.xlu0 %v90, 98
    %v92 = vpop.permute.xlu0 %91
    %vm93 = vcmask 818960
    %94 = vst.msk [vmem:[#allocation0] sm:$0x1] %vm93, %v92
    %s95 = scalar_lea.vmem %s0, 48
    %v96 = vld [vmem:[%s95] sm:$0x1]
    %97 = vrot.lane.b32.xlu0 %v96, 96
    %v98 = vpop.permute.xlu0 %97
    %vm99 = vcmask 802560
    %100 = vst.msk [vmem:[#allocation0] sm:$0x1] %vm99, %v98
    %s101 = scalar_lea.vmem %s0, 47
    %v102 = vld [vmem:[%s101] sm:$0x1]
    %103 = vrot.lane.b32.xlu0 %v102, 94
    %v104 = vpop.permute.xlu0 %103
    %vm105 = vcmask 786160
    %106 = vst.msk [vmem:[#allocation0] sm:$0x1] %vm105, %v104
    %s107 = scalar_lea.vmem %s0, 46
    %v108 = vld [vmem:[%s107] sm:$0x1]
    %109 = vrot.lane.b32.xlu0 %v108, 92
    %v110 = vpop.permute.xlu0 %109
    %vm111 = vcmask 769760
    %112 = vst.msk [vmem:[#allocation0] sm:$0x1] %vm111, %v110
    %s113 = scalar_lea.vmem %s0, 45
    %v114 = vld [vmem:[%s113] sm:$0x1]
    %115 = vrot.lane.b32.xlu0 %v114, 90
    %v116 = vpop.permute.xlu0 %115
    %vm117 = vcmask 753360
    %118 = vst.msk [vmem:[#allocation0] sm:$0x1] %vm117, %v116
    %s119 = scalar_lea.vmem %s0, 44
    %v120 = vld [vmem:[%s119] sm:$0x1]
    %121 = vrot.lane.b32.xlu0 %v120, 88
    %v122 = vpop.permute.xlu0 %121
    %vm123 = vcmask 736960
    %124 = vst.msk [vmem:[#allocation0] sm:$0x1] %vm123, %v122
    %s125 = scalar_lea.vmem %s0, 43
    %v126 = vld [vmem:[%s125] sm:$0x1]
    %127 = vrot.lane.b32.xlu0 %v126, 86
    %v128 = vpop.permute.xlu0 %127
    %vm129 = vcmask 720560
    %130 = vst.msk [vmem:[#allocation0] sm:$0x1] %vm129, %v128
    %s131 = scalar_lea.vmem %s0, 42
    %v132 = vld [vmem:[%s131] sm:$0x1]
    %133 = vrot.lane.b32.xlu0 %v132, 84
    %v134 = vpop.permute.xlu0 %133
    %vm135 = vcmask 704160
    %136 = vst.msk [vmem:[#allocation0] sm:$0x1] %vm135, %v134
    %s137 = scalar_lea.vmem %s0, 41
    %v138 = vld [vmem:[%s137] sm:$0x1]
    %139 = vrot.lane.b32.xlu0 %v138, 82
    %v140 = vpop.permute.xlu0 %139
    %vm141 = vcmask 687760
    %142 = vst.msk [vmem:[#allocation0] sm:$0x1] %vm141, %v140
    %s143 = scalar_lea.vmem %s0, 40
    %v144 = vld [vmem:[%s143] sm:$0x1]
    %145 = vrot.lane.b32.xlu0 %v144, 80
    %v146 = vpop.permute.xlu0 %145
    %vm147 = vcmask 671360
    %148 = vst.msk [vmem:[#allocation0] sm:$0x1] %vm147, %v146
    %s149 = scalar_lea.vmem %s0, 39
    %v150 = vld [vmem:[%s149] sm:$0x1]
    %151 = vrot.lane.b32.xlu0 %v150, 78
    %v152 = vpop.permute.xlu0 %151
    %vm153 = vcmask 654960
    %154 = vst.msk [vmem:[#allocation0] sm:$0x1] %vm153, %v152
    %s155 = scalar_lea.vmem %s0, 38
    %v156 = vld [vmem:[%s155] sm:$0x1]
    %157 = vrot.lane.b32.xlu0 %v156, 76
    %v158 = vpop.permute.xlu0 %157
    %vm159 = vcmask 638560
    %160 = vst.msk [vmem:[#allocation0] sm:$0x1] %vm159, %v158
    %s161 = scalar_lea.vmem %s0, 37
    %v162 = vld [vmem:[%s161] sm:$0x1]
    %163 = vrot.lane.b32.xlu0 %v162, 74
    %v164 = vpop.permute.xlu0 %163
    %vm165 = vcmask 622160
    %166 = vst.msk [vmem:[#allocation0] sm:$0x1] %vm165, %v164
    %s167 = scalar_lea.vmem %s0, 36
    %v168 = vld [vmem:[%s167] sm:$0x1]
    %169 = vrot.lane.b32.xlu0 %v168, 72
    %v170 = vpop.permute.xlu0 %169
    %vm171 = vcmask 605760
    %172 = vst.msk [vmem:[#allocation0] sm:$0x1] %vm171, %v170
    %s173 = scalar_lea.vmem %s0, 35
    %v174 = vld [vmem:[%s173] sm:$0x1]
    %175 = vrot.lane.b32.xlu0 %v174, 70
    %v176 = vpop.permute.xlu0 %175
    %vm177 = vcmask 589360
    %178 = vst.msk [vmem:[#allocation0] sm:$0x1] %vm177, %v176
    %s179 = scalar_lea.vmem %s0, 34
    %v180 = vld [vmem:[%s179] sm:$0x1]
    %181 = vrot.lane.b32.xlu0 %v180, 68
    %v182 = vpop.permute.xlu0 %181
    %vm183 = vcmask 572960
    %184 = vst.msk [vmem:[#allocation0] sm:$0x1] %vm183, %v182
    %s185 = scalar_lea.vmem %s0, 33
    %v186 = vld [vmem:[%s185] sm:$0x1]
    %187 = vrot.lane.b32.xlu0 %v186, 66
    %v188 = vpop.permute.xlu0 %187
    %vm189 = vcmask 556560
    %190 = vst.msk [vmem:[#allocation0] sm:$0x1] %vm189, %v188
    %s191 = scalar_lea.vmem %s0, 32
    %v192 = vld [vmem:[%s191] sm:$0x1]
    %193 = vrot.lane.b32.xlu0 %v192, 64
    %v194 = vpop.permute.xlu0 %193
    %vm195 = vcmask 540160
    %196 = vst.msk [vmem:[#allocation0] sm:$0x1] %vm195, %v194
    %s197 = scalar_lea.vmem %s0, 31
    %v198 = vld [vmem:[%s197] sm:$0x1]
    %199 = vrot.lane.b32.xlu0 %v198, 62
    %v200 = vpop.permute.xlu0 %199
    %vm201 = vcmask 523760
    %202 = vst.msk [vmem:[#allocation0] sm:$0x1] %vm201, %v200
    %s203 = scalar_lea.vmem %s0, 30
    %v204 = vld [vmem:[%s203] sm:$0x1]
    %205 = vrot.lane.b32.xlu0 %v204, 60
    %v206 = vpop.permute.xlu0 %205
    %vm207 = vcmask 507360
    %208 = vst.msk [vmem:[#allocation0] sm:$0x1] %vm207, %v206
    %s209 = scalar_lea.vmem %s0, 29
    %v210 = vld [vmem:[%s209] sm:$0x1]
    %211 = vrot.lane.b32.xlu0 %v210, 58
    %v212 = vpop.permute.xlu0 %211
    %vm213 = vcmask 490960
    %214 = vst.msk [vmem:[#allocation0] sm:$0x1] %vm213, %v212
    %s215 = scalar_lea.vmem %s0, 28
    %v216 = vld [vmem:[%s215] sm:$0x1]
    %217 = vrot.lane.b32.xlu0 %v216, 56
    %v218 = vpop.permute.xlu0 %217
    %vm219 = vcmask 474560
    %220 = vst.msk [vmem:[#allocation0] sm:$0x1] %vm219, %v218
    %s221 = scalar_lea.vmem %s0, 27
    %v222 = vld [vmem:[%s221] sm:$0x1]
    %223 = vrot.lane.b32.xlu0 %v222, 54
    %v224 = vpop.permute.xlu0 %223
    %vm225 = vcmask 458160
    %226 = vst.msk [vmem:[#allocation0] sm:$0x1] %vm225, %v224
    %s227 = scalar_lea.vmem %s0, 26
    %v228 = vld [vmem:[%s227] sm:$0x1]
    %229 = vrot.lane.b32.xlu0 %v228, 52
    %v230 = vpop.permute.xlu0 %229
    %vm231 = vcmask 441760
    %232 = vst.msk [vmem:[#allocation0] sm:$0x1] %vm231, %v230
    %s233 = scalar_lea.vmem %s0, 25
    %v234 = vld [vmem:[%s233] sm:$0x1]
    %235 = vrot.lane.b32.xlu0 %v234, 50
    %v236 = vpop.permute.xlu0 %235
    %vm237 = vcmask 425360
    %238 = vst.msk [vmem:[#allocation0] sm:$0x1] %vm237, %v236
    %s239 = scalar_lea.vmem %s0, 24
    %v240 = vld [vmem:[%s239] sm:$0x1]
    %241 = vrot.lane.b32.xlu0 %v240, 48
    %v242 = vpop.permute.xlu0 %241
    %vm243 = vcmask 408960
    %244 = vst.msk [vmem:[#allocation0] sm:$0x1] %vm243, %v242
    %s245 = scalar_lea.vmem %s0, 23
    %v246 = vld [vmem:[%s245] sm:$0x1]
    %247 = vrot.lane.b32.xlu0 %v246, 46
    %v248 = vpop.permute.xlu0 %247
    %vm249 = vcmask 392560
    %250 = vst.msk [vmem:[#allocation0] sm:$0x1] %vm249, %v248
    %s251 = scalar_lea.vmem %s0, 22
    %v252 = vld [vmem:[%s251] sm:$0x1]
    %253 = vrot.lane.b32.xlu0 %v252, 44
    %v254 = vpop.permute.xlu0 %253
    %vm255 = vcmask 376160
    %256 = vst.msk [vmem:[#allocation0] sm:$0x1] %vm255, %v254
    %s257 = scalar_lea.vmem %s0, 21
    %v258 = vld [vmem:[%s257] sm:$0x1]
    %259 = vrot.lane.b32.xlu0 %v258, 42
    %v260 = vpop.permute.xlu0 %259
    %vm261 = vcmask 359760
    %262 = vst.msk [vmem:[#allocation0] sm:$0x1] %vm261, %v260
    %s263 = scalar_lea.vmem %s0, 20
    %v264 = vld [vmem:[%s263] sm:$0x1]
    %265 = vrot.lane.b32.xlu0 %v264, 40
    %v266 = vpop.permute.xlu0 %265
    %vm267 = vcmask 343360
    %268 = vst.msk [vmem:[#allocation0] sm:$0x1] %vm267, %v266
    %s269 = scalar_lea.vmem %s0, 19
    %v270 = vld [vmem:[%s269] sm:$0x1]
    %271 = vrot.lane.b32.xlu0 %v270, 38
    %v272 = vpop.permute.xlu0 %271
    %vm273 = vcmask 326960
    %274 = vst.msk [vmem:[#allocation0] sm:$0x1] %vm273, %v272
    %s275 = scalar_lea.vmem %s0, 18
    %v276 = vld [vmem:[%s275] sm:$0x1]
    %277 = vrot.lane.b32.xlu0 %v276, 36
    %v278 = vpop.permute.xlu0 %277
    %vm279 = vcmask 310560
    %280 = vst.msk [vmem:[#allocation0] sm:$0x1] %vm279, %v278
    %s281 = scalar_lea.vmem %s0, 17
    %v282 = vld [vmem:[%s281] sm:$0x1]
    %283 = vrot.lane.b32.xlu0 %v282, 34
    %v284 = vpop.permute.xlu0 %283
    %vm285 = vcmask 294160
    %286 = vst.msk [vmem:[#allocation0] sm:$0x1] %vm285, %v284
    %s287 = scalar_lea.vmem %s0, 16
    %v288 = vld [vmem:[%s287] sm:$0x1]
    %289 = vrot.lane.b32.xlu0 %v288, 32
    %v290 = vpop.permute.xlu0 %289
    %vm291 = vcmask 277760
    %292 = vst.msk [vmem:[#allocation0] sm:$0x1] %vm291, %v290
    %s293 = scalar_lea.vmem %s0, 15
    %v294 = vld [vmem:[%s293] sm:$0x1]
    %295 = vrot.lane.b32.xlu0 %v294, 30
    %v296 = vpop.permute.xlu0 %295
    %vm297 = vcmask 261360
    %298 = vst.msk [vmem:[#allocation0] sm:$0x1] %vm297, %v296
    %s299 = scalar_lea.vmem %s0, 14
    %v300 = vld [vmem:[%s299] sm:$0x1]
    %301 = vrot.lane.b32.xlu0 %v300, 28
    %v302 = vpop.permute.xlu0 %301
    %vm303 = vcmask 244960
    %304 = vst.msk [vmem:[#allocation0] sm:$0x1] %vm303, %v302
    %s305 = scalar_lea.vmem %s0, 13
    %v306 = vld [vmem:[%s305] sm:$0x1]
    %307 = vrot.lane.b32.xlu0 %v306, 26
    %v308 = vpop.permute.xlu0 %307
    %vm309 = vcmask 228560
    %310 = vst.msk [vmem:[#allocation0] sm:$0x1] %vm309, %v308
    %s311 = scalar_lea.vmem %s0, 12
    %v312 = vld [vmem:[%s311] sm:$0x1]
    %313 = vrot.lane.b32.xlu0 %v312, 24
    %v314 = vpop.permute.xlu0 %313
    %vm315 = vcmask 212160
    %316 = vst.msk [vmem:[#allocation0] sm:$0x1] %vm315, %v314
    %s317 = scalar_lea.vmem %s0, 11
    %v318 = vld [vmem:[%s317] sm:$0x1]
    %319 = vrot.lane.b32.xlu0 %v318, 22
    %v320 = vpop.permute.xlu0 %319
    %vm321 = vcmask 195760
    %322 = vst.msk [vmem:[#allocation0] sm:$0x1] %vm321, %v320
    %s323 = scalar_lea.vmem %s0, 10
    %v324 = vld [vmem:[%s323] sm:$0x1]
    %325 = vrot.lane.b32.xlu0 %v324, 20
    %v326 = vpop.permute.xlu0 %325
    %vm327 = vcmask 179360
    %328 = vst.msk [vmem:[#allocation0] sm:$0x1] %vm327, %v326
    %s329 = scalar_lea.vmem %s0, 9
    %v330 = vld [vmem:[%s329] sm:$0x1]
    %331 = vrot.lane.b32.xlu0 %v330, 18
    %v332 = vpop.permute.xlu0 %331
    %vm333 = vcmask 162960
    %334 = vst.msk [vmem:[#allocation0] sm:$0x1] %vm333, %v332
    %s335 = scalar_lea.vmem %s0, 8
    %v336 = vld [vmem:[%s335] sm:$0x1]
    %337 = vrot.lane.b32.xlu0 %v336, 16
    %v338 = vpop.permute.xlu0 %337
    %vm339 = vcmask 146560
    %340 = vst.msk [vmem:[#allocation0] sm:$0x1] %vm339, %v338
    %s341 = scalar_lea.vmem %s0, 7
    %v342 = vld [vmem:[%s341] sm:$0x1]
    %343 = vrot.lane.b32.xlu0 %v342, 14
    %v344 = vpop.permute.xlu0 %343
    %vm345 = vcmask 130160
    %346 = vst.msk [vmem:[#allocation0] sm:$0x1] %vm345, %v344
    %s347 = scalar_lea.vmem %s0, 6
    %v348 = vld [vmem:[%s347] sm:$0x1]
    %349 = vrot.lane.b32.xlu0 %v348, 12
    %v350 = vpop.permute.xlu0 %349
    %vm351 = vcmask 113760
    %352 = vst.msk [vmem:[#allocation0] sm:$0x1] %vm351, %v350
    %s353 = scalar_lea.vmem %s0, 5
    %v354 = vld [vmem:[%s353] sm:$0x1]
    %355 = vrot.lane.b32.xlu0 %v354, 10
    %v356 = vpop.permute.xlu0 %355
    %vm357 = vcmask 97360
    %358 = vst.msk [vmem:[#allocation0] sm:$0x1] %vm357, %v356
    %s359 = scalar_lea.vmem %s0, 4
    %v360 = vld [vmem:[%s359] sm:$0x1]
    %361 = vrot.lane.b32.xlu0 %v360, 8
    %v362 = vpop.permute.xlu0 %361
    %vm363 = vcmask 80960
    %364 = vst.msk [vmem:[#allocation0] sm:$0x1] %vm363, %v362
    %s365 = scalar_lea.vmem %s0, 3
    %v366 = vld [vmem:[%s365] sm:$0x1]
    %367 = vrot.lane.b32.xlu0 %v366, 6
    %v368 = vpop.permute.xlu0 %367
    %vm369 = vcmask 64560
    %370 = vst.msk [vmem:[#allocation0] sm:$0x1] %vm369, %v368
    %s371 = scalar_lea.vmem %s0, 2
    %v372 = vld [vmem:[%s371] sm:$0x1]
    %373 = vrot.lane.b32.xlu0 %v372, 4
    %v374 = vpop.permute.xlu0 %373
    %vm375 = vcmask 48160
    %376 = vst.msk [vmem:[#allocation0] sm:$0x1] %vm375, %v374
    %s377 = scalar_lea.vmem %s0, 1
    %v378 = vld [vmem:[%s377] sm:$0x1]
    %379 = vrot.lane.b32.xlu0 %v378, 2
    %v380 = vpop.permute.xlu0 %379
    %vm381 = vcmask 31760
    %382 = vst.msk [vmem:[#allocation0] sm:$0x1] %vm381, %v380
    %s384 = sshllo.u32 0, 1
    %v386 = vld [vmem:[#allocation0] sm:%s384]
    %s387 = sshllo.u32 0, 1
    %388 = vst [vmem:[%s1] sm:%s387] %v386

// kernel: linear_pallas.1
$region0: #{linear_pallas.1}
  #allocation0 [shape = 'u32[]', space=smem, size = 0x4, offset = 0x4, fixed_abs, tag = 'smem constant byte address 0x4 - core index']
  #allocation1 [shape = 'u32[144,128]{1,0:T(1,128)}', space=vmem, size = 0x12000, scoped, tag = 'internal scratch']
  %s0 = inlined_call_operand.vmem [shape: f32[8,640], index: 0, kind: input, shape index: {}]
  %s1 = inlined_call_operand.vmem [shape: f32[640,128], index: 1, kind: input, shape index: {}]
  %s2 = inlined_call_operand.vmem [shape: f32[1,128], index: 2, kind: input, shape index: {}]
  %s3 = inlined_call_operand.vmem [shape: f32[8,128], index: 3, kind: output, shape index: {}]
  %s4 = sld [smem:[#allocation0]]
  $region22: #{linear_pallas.1} parent=0
    _
  %s6 = ssub.s32 1, %s4
  %s7 = scalar_select 0, %s6, %s4
  // Predicated region
  $region2: #{linear_pallas.1} parent=0 // pred_check
    _
  $region3: #{linear_pallas.1} parent=0 // pred_check_branch
    %9 = sbr.rel (0) target = $region5
  $region4: #{linear_pallas.1} parent=0 // pred_region
    _
  $region5: #{linear_pallas.1} parent=0 // pred_fallthru
    _
  // Predicated region
  $region6: #{linear_pallas.1} parent=0 // pred_check
    _
  $region7: #{linear_pallas.1} parent=0 // pred_check_branch
    %11 = sbr.rel (0) target = $region9
  $region8: #{linear_pallas.1} parent=0 // pred_region
    _
  $region9: #{linear_pallas.1} parent=0 // pred_fallthru
    _
  // Predicated region
  $region10: #{linear_pallas.1} parent=0 // pred_check
    _
  $region11: #{linear_pallas.1} parent=0 // pred_check_branch
    %13 = sbr.rel (0) target = $region13
  $region12: #{linear_pallas.1} parent=0 // pred_region
    _
  $region13: #{linear_pallas.1} parent=0 // pred_fallthru
    _
  %v14 = vld [vmem:[%s0] sm:$0xff]
  %v15 = vld [vmem:[%s0 + $0x8] sm:$0xff]
  %v16 = vld [vmem:[%s0 + $0x10] sm:$0xff]
  %v17 = vld [vmem:[%s0 + $0x18] sm:$0xff]
  %v18 = vld [vmem:[%s0 + $0x20] sm:$0xff]
  %v19 = vld [vmem:[%s1] sm:$0xff]
  %v20 = vld [vmem:[%s1 + $0x8] sm:$0xff]
  %v21 = vld [vmem:[%s1 + $0x10] sm:$0xff]
  %v22 = vld [vmem:[%s1 + $0x18] sm:$0xff]
  %v23 = vld [vmem:[%s1 + $0x20] sm:$0xff]
  %v24 = vld [vmem:[%s1 + $0x28] sm:$0xff]
  %v25 = vld [vmem:[%s1 + $0x30] sm:$0xff]
  %v26 = vld [vmem:[%s1 + $0x38] sm:$0xff]
  %v27 = vld [vmem:[%s1 + $0x40] sm:$0xff]
  %v28 = vld [vmem:[%s1 + $0x48] sm:$0xff]
  %v29 = vld [vmem:[%s1 + $0x50] sm:$0xff]
  %v30 = vld [vmem:[%s1 + $0x58] sm:$0xff]
  %v31 = vld [vmem:[%s1 + $0x60] sm:$0xff]
  %v32 = vld [vmem:[%s1 + $0x68] sm:$0xff]
  %v33 = vld [vmem:[%s1 + $0x70] sm:$0xff]
  %v34 = vld [vmem:[%s1 + $0x78] sm:$0xff]
  %v35 = vld [vmem:[%s1 + $0x80] sm:$0xff]
  %v36 = vld [vmem:[%s1 + $0x88] sm:$0xff]
  %v37 = vld [vmem:[%s1 + $0x90] sm:$0xff]
  %v38 = vld [vmem:[%s1 + $0x98] sm:$0xff]
  %v39 = vld [vmem:[%s1 + $0xa0] sm:$0xff]
  %v40 = vld [vmem:[%s1 + $0xa8] sm:$0xff]
  %v41 = vld [vmem:[%s1 + $0xb0] sm:$0xff]
  %v42 = vld [vmem:[%s1 + $0xb8] sm:$0xff]
  %v43 = vld [vmem:[%s1 + $0xc0] sm:$0xff]
  %v44 = vld [vmem:[%s1 + $0xc8] sm:$0xff]
  %v45 = vld [vmem:[%s1 + $0xd0] sm:$0xff]
  %v46 = vld [vmem:[%s1 + $0xd8] sm:$0xff]
  %v47 = vld [vmem:[%s1 + $0xe0] sm:$0xff]
  %v48 = vld [vmem:[%s1 + $0xe8] sm:$0xff]
  %v49 = vld [vmem:[%s1 + $0xf0] sm:$0xff]
  %v50 = vld [vmem:[%s1 + $0xf8] sm:$0xff]
  %v51 = vld [vmem:[%s1 + $0x100] sm:$0xff]
  %v52 = vld [vmem:[%s1 + $0x108] sm:$0xff]
  %v53 = vld [vmem:[%s1 + $0x110] sm:$0xff]
  %v54 = vld [vmem:[%s1 + $0x118] sm:$0xff]
  %v55 = vld [vmem:[%s1 + $0x120] sm:$0xff]
  %v56 = vld [vmem:[%s1 + $0x128] sm:$0xff]
  %v57 = vld [vmem:[%s1 + $0x130] sm:$0xff]
  %v58 = vld [vmem:[%s1 + $0x138] sm:$0xff]
  %v59 = vld [vmem:[%s1 + $0x140] sm:$0xff]
  %v60 = vld [vmem:[%s1 + $0x148] sm:$0xff]
  %v61 = vld [vmem:[%s1 + $0x150] sm:$0xff]
  %v62 = vld [vmem:[%s1 + $0x158] sm:$0xff]
  %v63 = vld [vmem:[%s1 + $0x160] sm:$0xff]
  %v64 = vld [vmem:[%s1 + $0x168] sm:$0xff]
  %v65 = vld [vmem:[%s1 + $0x170] sm:$0xff]
  %v66 = vld [vmem:[%s1 + $0x178] sm:$0xff]
  %v67 = vld [vmem:[%s1 + $0x180] sm:$0xff]
  %v68 = vld [vmem:[%s1 + $0x188] sm:$0xff]
  %v69 = vld [vmem:[%s1 + $0x190] sm:$0xff]
  %v70 = vld [vmem:[%s1 + $0x198] sm:$0xff]
  %v71 = vld [vmem:[%s1 + $0x1a0] sm:$0xff]
  %v72 = vld [vmem:[%s1 + $0x1a8] sm:$0xff]
  %v73 = vld [vmem:[%s1 + $0x1b0] sm:$0xff]
  %v74 = vld [vmem:[%s1 + $0x1b8] sm:$0xff]
  %v75 = vld [vmem:[%s1 + $0x1c0] sm:$0xff]
  %v76 = vld [vmem:[%s1 + $0x1c8] sm:$0xff]
  %v77 = vld [vmem:[%s1 + $0x1d0] sm:$0xff]
  %v78 = vld [vmem:[%s1 + $0x1d8] sm:$0xff]
  %v79 = vld [vmem:[%s1 + $0x1e0] sm:$0xff]
  %v80 = vld [vmem:[%s1 + $0x1e8] sm:$0xff]
  %v81 = vld [vmem:[%s1 + $0x1f0] sm:$0xff]
  %v82 = vld [vmem:[%s1 + $0x1f8] sm:$0xff]
  %v83 = vld [vmem:[%s1 + $0x200] sm:$0xff]
  %v84 = vld [vmem:[%s1 + $0x208] sm:$0xff]
  %v85 = vld [vmem:[%s1 + $0x210] sm:$0xff]
  %v86 = vld [vmem:[%s1 + $0x218] sm:$0xff]
  %v87 = vld [vmem:[%s1 + $0x220] sm:$0xff]
  %v88 = vld [vmem:[%s1 + $0x228] sm:$0xff]
  %v89 = vld [vmem:[%s1 + $0x230] sm:$0xff]
  %v90 = vld [vmem:[%s1 + $0x238] sm:$0xff]
  %v91 = vld [vmem:[%s1 + $0x240] sm:$0xff]
  %v92 = vld [vmem:[%s1 + $0x248] sm:$0xff]
  %v93 = vld [vmem:[%s1 + $0x250] sm:$0xff]
  %v94 = vld [vmem:[%s1 + $0x258] sm:$0xff]
  %v95 = vld [vmem:[%s1 + $0x260] sm:$0xff]
  %v96 = vld [vmem:[%s1 + $0x268] sm:$0xff]
  %v97 = vld [vmem:[%s1 + $0x270] sm:$0xff]
  %v98 = vld [vmem:[%s1 + $0x278] sm:$0xff]
  %v99 = vld [vmem:[%s2] sm:$0x1]
  %v101 = vlaneseq
  %v102 = vshrl.u32 %v101, 7
  %v103 = vsub.s32 0, %v102
  %v104 = vrot.slane %v99, %v103
  %106 = vmatprep.subr.mxu0 0.0
  %107 = vmatpush1.msra.mxu0 %v19
  %108 = vmatprep.subr.mxu0 0.0
  %109 = vmatpush1.msra.mxu0 %v20
  %110 = vmatprep.subr.mxu0 0.0
  %111 = vmatpush1.msra.mxu0 %v21
  %112 = vmatprep.subr.mxu0 0.0
  %113 = vmatpush1.msra.mxu0 %v22
  %114 = vmatprep.subr.mxu0 0.0
  %115 = vmatpush1.msra.mxu0 %v23
  %116 = vmatprep.subr.mxu0 0.0
  %117 = vmatpush1.msra.mxu0 %v24
  %118 = vmatprep.subr.mxu0 0.0
  %119 = vmatpush1.msra.mxu0 %v25
  %120 = vmatprep.subr.mxu0 0.0
  %121 = vmatpush1.msra.mxu0 %v26
  %122 = vmatprep.subr.mxu0 0.0
  %123 = vmatpush1.msra.mxu0 %v27
  %124 = vmatprep.subr.mxu0 0.0
  %125 = vmatpush1.msra.mxu0 %v28
  %126 = vmatprep.subr.mxu0 0.0
  %127 = vmatpush1.msra.mxu0 %v29
  %128 = vmatprep.subr.mxu0 0.0
  %129 = vmatpush1.msra.mxu0 %v30
  %130 = vmatprep.subr.mxu0 0.0
  %131 = vmatpush1.msra.mxu0 %v31
  %132 = vmatprep.subr.mxu0 0.0
  %133 = vmatpush1.msra.mxu0 %v32
  %134 = vmatprep.subr.mxu0 0.0
  %135 = vmatpush1.msra.mxu0 %v33
  %136 = vmatprep.subr.mxu0 0.0
  %137 = vmatpush1.msra.mxu0 %v34
  %138 = vmatprep.subr.mxu0 0.0
  %139 = vmatpush1.msra.mxu0 %v35
  %140 = vmatprep.subr.mxu0 0.0
  %141 = vmatpush1.msra.mxu0 %v36
  %142 = vmatprep.subr.mxu0 0.0
  %143 = vmatpush1.msra.mxu0 %v37
  %144 = vmatprep.subr.mxu0 0.0
  %145 = vmatpush1.msra.mxu0 %v38
  %146 = vmatprep.subr.mxu0 0.0
  %147 = vmatpush1.msra.mxu0 %v39
  %148 = vmatprep.subr.mxu0 0.0
  %149 = vmatpush1.msra.mxu0 %v40
  %150 = vmatprep.subr.mxu0 0.0
  %151 = vmatpush1.msra.mxu0 %v41
  %152 = vmatprep.subr.mxu0 0.0
  %153 = vmatpush1.msra.mxu0 %v42
  %154 = vmatprep.subr.mxu0 0.0
  %155 = vmatpush1.msra.mxu0 %v43
  %156 = vmatprep.subr.mxu0 0.0
  %157 = vmatpush1.msra.mxu0 %v44
  %158 = vmatprep.subr.mxu0 0.0
  %159 = vmatpush1.msra.mxu0 %v45
  %160 = vmatprep.subr.mxu0 0.0
  %161 = vmatpush1.msra.mxu0 %v46
  %162 = vmatprep.subr.mxu0 0.0
  %163 = vmatpush1.msra.mxu0 %v47
  %164 = vmatprep.subr.mxu0 0.0
  %165 = vmatpush1.msra.mxu0 %v48
  %166 = vmatprep.subr.mxu0 0.0
  %167 = vmatpush1.msra.mxu0 %v49
  %168 = vmatprep.subr.mxu0 0.0
  %169 = vmatpush1.msra.mxu0 %v50
  %170 = vmatprep.mubr.f32.mxu0 %v15
  %171 = vmatmul.mubr.f32.gmra.mrb[0].mxu0 %v14
  %v172 = vpop.f32.mrb[0].mxu0
  %v173 = vadd.f32 %v104, %v172
  %v174 = vpop.f32.mrb[0].mxu0
  %175 = vdwg.mxu0
  %176 = vmatprep.subr.mxu0 0.0
  %177 = vmatpush1.msra.mxu0 %v51
  %178 = vmatprep.subr.mxu0 0.0
  %179 = vmatpush1.msra.mxu0 %v52
  %180 = vmatprep.subr.mxu0 0.0
  %181 = vmatpush1.msra.mxu0 %v53
  %182 = vmatprep.subr.mxu0 0.0
  %183 = vmatpush1.msra.mxu0 %v54
  %184 = vmatprep.subr.mxu0 0.0
  %185 = vmatpush1.msra.mxu0 %v55
  %186 = vmatprep.subr.mxu0 0.0
  %187 = vmatpush1.msra.mxu0 %v56
  %188 = vmatprep.subr.mxu0 0.0
  %189 = vmatpush1.msra.mxu0 %v57
  %190 = vmatprep.subr.mxu0 0.0
  %191 = vmatpush1.msra.mxu0 %v58
  %192 = vmatprep.subr.mxu0 0.0
  %193 = vmatpush1.msra.mxu0 %v59
  %194 = vmatprep.subr.mxu0 0.0
  %195 = vmatpush1.msra.mxu0 %v60
  %196 = vmatprep.subr.mxu0 0.0
  %197 = vmatpush1.msra.mxu0 %v61
  %198 = vmatprep.subr.mxu0 0.0
  %199 = vmatpush1.msra.mxu0 %v62
  %200 = vmatprep.subr.mxu0 0.0
  %201 = vmatpush1.msra.mxu0 %v63
  %202 = vmatprep.subr.mxu0 0.0
  %203 = vmatpush1.msra.mxu0 %v64
  %204 = vmatprep.subr.mxu0 0.0
  %205 = vmatpush1.msra.mxu0 %v65
  %206 = vmatprep.subr.mxu0 0.0
  %207 = vmatpush1.msra.mxu0 %v66
  %208 = vmatprep.subr.mxu0 0.0
  %209 = vmatpush1.msra.mxu0 %v67
  %210 = vmatprep.subr.mxu0 0.0
  %211 = vmatpush1.msra.mxu0 %v68
  %212 = vmatprep.subr.mxu0 0.0
  %213 = vmatpush1.msra.mxu0 %v69
  %214 = vmatprep.subr.mxu0 0.0
  %215 = vmatpush1.msra.mxu0 %v70
  %216 = vmatprep.subr.mxu0 0.0
  %217 = vmatpush1.msra.mxu0 %v71
  %218 = vmatprep.subr.mxu0 0.0
  %219 = vmatpush1.msra.mxu0 %v72
  %220 = vmatprep.subr.mxu0 0.0
  %221 = vmatpush1.msra.mxu0 %v73
  %222 = vmatprep.subr.mxu0 0.0
  %223 = vmatpush1.msra.mxu0 %v74
  %224 = vmatprep.subr.mxu0 0.0
  %225 = vmatpush1.msra.mxu0 %v75
  %226 = vmatprep.subr.mxu0 0.0
  %227 = vmatpush1.msra.mxu0 %v76
  %228 = vmatprep.subr.mxu0 0.0
  %229 = vmatpush1.msra.mxu0 %v77
  %230 = vmatprep.subr.mxu0 0.0
  %231 = vmatpush1.msra.mxu0 %v78
  %232 = vmatprep.subr.mxu0 0.0
  %233 = vmatpush1.msra.mxu0 %v79
  %234 = vmatprep.subr.mxu0 0.0
  %235 = vmatpush1.msra.mxu0 %v80
  %236 = vmatprep.subr.mxu0 0.0
  %237 = vmatpush1.msra.mxu0 %v81
  %238 = vmatprep.subr.mxu0 0.0
  %239 = vmatpush1.msra.mxu0 %v82
  %240 = vmatprep.mubr.f32.mxu0 %v17
  %241 = vmatmul.mubr.f32.gmra.mrb[0].mxu0 %v16
  %v242 = vpop.f32.mrb[0].mxu0
  %v243 = vadd.f32 %v173, %v242
  %v244 = vpop.f32.mrb[0].mxu0
  %245 = vdwg.mxu0
  %246 = vmatprep.subr.mxu0 0.0
  %247 = vmatpush1.msra.mxu0 %v83
  %248 = vmatprep.subr.mxu0 0.0
  %249 = vmatpush1.msra.mxu0 %v84
  %250 = vmatprep.subr.mxu0 0.0
  %251 = vmatpush1.msra.mxu0 %v85
  %252 = vmatprep.subr.mxu0 0.0
  %253 = vmatpush1.msra.mxu0 %v86
  %254 = vmatprep.subr.mxu0 0.0
  %255 = vmatpush1.msra.mxu0 %v87
  %256 = vmatprep.subr.mxu0 0.0
  %257 = vmatpush1.msra.mxu0 %v88
  %258 = vmatprep.subr.mxu0 0.0
  %259 = vmatpush1.msra.mxu0 %v89
  %260 = vmatprep.subr.mxu0 0.0
  %261 = vmatpush1.msra.mxu0 %v90
  %262 = vmatprep.subr.mxu0 0.0
  %263 = vmatpush1.msra.mxu0 %v91
  %264 = vmatprep.subr.mxu0 0.0
  %265 = vmatpush1.msra.mxu0 %v92
  %266 = vmatprep.subr.mxu0 0.0
  %267 = vmatpush1.msra.mxu0 %v93
  %268 = vmatprep.subr.mxu0 0.0
  %269 = vmatpush1.msra.mxu0 %v94
  %270 = vmatprep.subr.mxu0 0.0
  %271 = vmatpush1.msra.mxu0 %v95
  %272 = vmatprep.subr.mxu0 0.0
  %273 = vmatpush1.msra.mxu0 %v96
  %274 = vmatprep.subr.mxu0 0.0
  %275 = vmatpush1.msra.mxu0 %v97
  %276 = vmatprep.subr.mxu0 0.0
  %277 = vmatpush1.msra.mxu0 %v98
  %278 = vmatprep.subr.mxu0 0.0
  %279 = vmatpush1.msra.mxu0 0.0
  %280 = vmatprep.subr.mxu0 0.0
  %281 = vmatpush1.msra.mxu0 0.0
  %282 = vmatprep.subr.mxu0 0.0
  %283 = vmatpush1.msra.mxu0 0.0
  %284 = vmatprep.subr.mxu0 0.0
  %285 = vmatpush1.msra.mxu0 0.0
  %286 = vmatprep.subr.mxu0 0.0
  %287 = vmatpush1.msra.mxu0 0.0
  %288 = vmatprep.subr.mxu0 0.0
  %289 = vmatpush1.msra.mxu0 0.0
  %290 = vmatprep.subr.mxu0 0.0
  %291 = vmatpush1.msra.mxu0 0.0
  %292 = vmatprep.subr.mxu0 0.0
  %293 = vmatpush1.msra.mxu0 0.0
  %294 = vmatprep.subr.mxu0 0.0
  %295 = vmatpush1.msra.mxu0 0.0
  %296 = vmatprep.subr.mxu0 0.0
  %297 = vmatpush1.msra.mxu0 0.0
  %298 = vmatprep.subr.mxu0 0.0
  %299 = vmatpush1.msra.mxu0 0.0
  %300 = vmatprep.subr.mxu0 0.0
  %301 = vmatpush1.msra.mxu0 0.0
  %302 = vmatprep.subr.mxu0 0.0
  %303 = vmatpush1.msra.mxu0 0.0
  %304 = vmatprep.subr.mxu0 0.0
  %305 = vmatpush1.msra.mxu0 0.0
  %306 = vmatprep.subr.mxu0 0.0
  %307 = vmatpush1.msra.mxu0 0.0
  %308 = vmatprep.subr.mxu0 0.0
  %309 = vmatpush1.msra.mxu0 0.0
  %310 = vmatprep.mubr.f32.mxu0 0.0
  %311 = vmatmul.mubr.f32.gmra.mrb[0].mxu0 %v18
  %v312 = vpop.f32.mrb[0].mxu0
  %v313 = vadd.f32 %v243, %v312
  %v314 = vpop.f32.mrb[0].mxu0
  %315 = vdwg.mxu0
  %316 = vst [vmem:[%s3] sm:$0xff] %v313
  // Predicated region
  $region14: #{linear_pallas.1} parent=0 // pred_check
    _
  $region15: #{linear_pallas.1} parent=0 // pred_check_branch
    %318 = sbr.rel (0) target = $region17
  $region16: #{linear_pallas.1} parent=0 // pred_region
    _
  $region17: #{linear_pallas.1} parent=0 // pred_fallthru
    _
  // Predicated region
  $region18: #{linear_pallas.1} parent=0 // pred_check
    _
  $region19: #{linear_pallas.1} parent=0 // pred_check_branch
    %320 = sbr.rel (0) target = $region21
  $region20: #{linear_pallas.1} parent=0 // pred_region
    _
  $region21: #{linear_pallas.1} parent=0 // pred_fallthru
    _

</llo_original>
